<compile_context>
chip_gen: v6e
topology: v6e:2x2x1
jax: 0.10.0
libtpu: 0.0.40
codegen_flags: <defaults>
</compile_context>

<pallas_src>
import jax
import jax.numpy as jnp
from jax.experimental import pallas as pl
from jax.experimental.pallas import tpu as pltpu


def _round_up(x, m):
    return (x + m - 1) // m * m


def ncf_kernel(xm_ref, gu_ref, gi_ref,
               w1_ref, b1_ref,
               w2_ref, b2_ref,
               w3_ref, b3_ref,
               wcm_ref, wcg_ref, bc_ref,
               o_ref):
    f32 = jnp.float32
    bf16 = jnp.bfloat16

    # ---- MLP tower (feature-major: [features, tile_b]) ----
    # layer 1: Linear(2Cm -> 2Cm) + ReLU
    h = jnp.dot(w1_ref[...], xm_ref[...], preferred_element_type=f32) + b1_ref[...]
    h = jnp.maximum(h, 0.0)
    # layer 2: Linear(2Cm -> Cm) + ReLU
    h = jnp.dot(w2_ref[...], h.astype(bf16), preferred_element_type=f32) + b2_ref[...]
    h = jnp.maximum(h, 0.0)
    # layer 3: Linear(Cm -> Cm//2) + ReLU
    h = jnp.dot(w3_ref[...], h.astype(bf16), preferred_element_type=f32) + b3_ref[...]
    h = jnp.maximum(h, 0.0)                                   # (Cm//2, tile_b) f32

    # ---- GMF tower: elementwise product (f32 on the VPU) ----
    g = gu_ref[...].astype(f32) * gi_ref[...].astype(f32)     # (Cg, tile_b) f32

    # ---- Final classifier: VPU multiply + sublane reduce -> lane-dense row ----
    logits = (jnp.sum(h * wcm_ref[...], axis=0, keepdims=True)
              + jnp.sum(g * wcg_ref[...], axis=0, keepdims=True)
              + bc_ref[...])                                  # (1, tile_b) f32
    o_ref[...] = logits


def ncf_forward(mlp_feat, gmf_user_feat, gmf_item_feat, params, *, tile_b=512):
    """mlp_feat: [B, 2*Cm] f32 (concat of MLP user/item embeddings),
       gmf_user_feat / gmf_item_feat: [B, Cg] f32.  Returns logits [B, 1] f32."""
    assert tile_b % 128 == 0
    w1, b1, w2, b2, w3, b3, wcm, wcg, bc = params

    B, two_cm = mlp_feat.shape
    Cg = gmf_user_feat.shape[1]
    Ch = w3.shape[0]                      # Cm // 2
    assert two_cm % 8 == 0 and Cg % 8 == 0 and Ch % 8 == 0

    # Lane-axis batch tile: multiple of 128 (fills MXU lanes), default 512.
    tb = min(tile_b, _round_up(B, 128))
    b_pad = _round_up(B, tb)
    pad = b_pad - B

    def prep(x):
        # pad batch, move batch to the lane axis, bf16 for the MXU / halved DMA
        return jnp.pad(x, ((0, pad), (0, 0))).T.astype(jnp.bfloat16)

    xm = prep(mlp_feat)                   # (2Cm, b_pad)
    gu = prep(gmf_user_feat)              # (Cg,  b_pad)
    gi = prep(gmf_item_feat)              # (Cg,  b_pad)

    w1b = w1.astype(jnp.bfloat16)
    w2b = w2.astype(jnp.bfloat16)
    w3b = w3.astype(jnp.bfloat16)

    def batch_spec(rows):
        return pl.BlockSpec((rows, tb), lambda i: (0, i))

    def full_spec(arr):
        return pl.BlockSpec(arr.shape, lambda i: (0, 0))

    grid = (b_pad // tb,)
    out = pl.pallas_call(
        ncf_kernel,
        out_shape=jax.ShapeDtypeStruct((1, b_pad), jnp.float32),
        grid_spec=pltpu.PrefetchScalarGridSpec(
            num_scalar_prefetch=0,
            grid=grid,
            in_specs=[
                batch_spec(two_cm), batch_spec(Cg), batch_spec(Cg),
                full_spec(w1b), full_spec(b1),
                full_spec(w2b), full_spec(b2),
                full_spec(w3b), full_spec(b3),
                full_spec(wcm), full_spec(wcg), full_spec(bc),
            ],
            out_specs=pl.BlockSpec((1, tb), lambda i: (0, i)),
        ),
        compiler_params=pltpu.CompilerParams(
            dimension_semantics=("parallel",)),
    )(xm, gu, gi, w1b, b1, w2b, b2, w3b, b3, wcm, wcg, bc)

    return out[0, :B].reshape(B, 1)


def init_params(key, n_users, n_items, mlp_C, gmf_C):
    """Deterministic init mirroring the PyTorch NCF module's shapes.
    Weights kept in PyTorch nn.Linear orientation (out, in); biases as (out, 1)."""
    Cm, Cg = mlp_C, gmf_C
    ks = jax.random.split(key, 14)

    # Embedding tables ~ N(0, 0.1)
    mlp_ut = 0.1 * jax.random.normal(ks[0], (n_users, Cm), jnp.float32)
    mlp_it = 0.1 * jax.random.normal(ks[1], (n_items, Cm), jnp.float32)
    gmf_ut = 0.1 * jax.random.normal(ks[2], (n_users, Cg), jnp.float32)
    gmf_it = 0.1 * jax.random.normal(ks[3], (n_items, Cg), jnp.float32)

    def linear(kw, kb, fan_in, fan_out):
        # PyTorch nn.Linear default init: U(-1/sqrt(fan_in), 1/sqrt(fan_in))
        bound = 1.0 / jnp.sqrt(jnp.float32(fan_in))
        w = jax.random.uniform(kw, (fan_out, fan_in), jnp.float32, -bound, bound)
        b = jax.random.uniform(kb, (fan_out, 1), jnp.float32, -bound, bound)
        return w, b

    w1, b1 = linear(ks[4], ks[5], 2 * Cm, 2 * Cm)
    w2, b2 = linear(ks[6], ks[7], 2 * Cm, Cm)
    w3, b3 = linear(ks[8], ks[9], Cm, Cm // 2)
    wc, bc = linear(ks[10], ks[11], Cm // 2 + Cg, 1)   # NCF.clf

    # split the NCF classifier into its MLP-part / GMF-part columns
    wcm = wc[0, :Cm // 2].reshape(Cm // 2, 1)
    wcg = wc[0, Cm // 2:].reshape(Cg, 1)

    tables = (mlp_ut, mlp_it, gmf_ut, gmf_it)
    params = (w1, b1, w2, b2, w3, b3, wcm, wcg, bc)
    return tables, params


def reference_forward(user_ids, item_ids, tables, params):
    """Pure-JAX f32 reference matching NCF.forward."""
    mlp_ut, mlp_it, gmf_ut, gmf_it = tables
    w1, b1, w2, b2, w3, b3, wcm, wcg, bc = params
    x = jnp.concatenate([mlp_ut[user_ids], mlp_it[item_ids]], axis=-1)
    h = jax.nn.relu(x @ w1.T + b1[:, 0])
    h = jax.nn.relu(h @ w2.T + b2[:, 0])
    h = jax.nn.relu(h @ w3.T + b3[:, 0])                 # MLP.part_forward
    g = gmf_ut[user_ids] * gmf_it[item_ids]              # GMF.part_forward
    return h @ wcm + g @ wcg + bc[0, 0]                  # NCF.clf


if __name__ == "__main__":
    n_users, n_items = 64, 64
    mlp_n_components, gmf_n_components = 32, 16
    batch = 16

    key = jax.random.PRNGKey(0)
    k_param, k_u, k_i = jax.random.split(key, 3)
    tables, params = init_params(k_param, n_users, n_items,
                                 mlp_n_components, gmf_n_components)
    mlp_ut, mlp_it, gmf_ut, gmf_it = tables

    user_ids = jax.random.randint(k_u, (batch,), 0, n_users)
    item_ids = jax.random.randint(k_i, (batch,), 0, n_items)

    # Embedding gather + MLP-feature concat done as plain-JAX glue.
    mlp_feat = jnp.concatenate([mlp_ut[user_ids], mlp_it[item_ids]], axis=-1)
    gmf_user_feat = gmf_ut[user_ids]
    gmf_item_feat = gmf_it[item_ids]

    out = ncf_forward(mlp_feat, gmf_user_feat, gmf_item_feat, params, tile_b=512)
    out = jax.block_until_ready(out)

    ref = reference_forward(user_ids, item_ids, tables, params)
    assert out.shape == (batch, 1)
    assert jnp.allclose(out, ref, atol=2e-2, rtol=2e-2), "mismatch vs reference"

    print("KERNEL_OK")
</pallas_src>

<mosaic_0001>
module attributes {stable_mosaic.version = 11 : i64} {
  func.func @ncf_kernel(%arg0: i32, %arg1: memref<64x128xbf16, #tpu.memory_space<vmem>>, %arg2: memref<16x128xbf16, #tpu.memory_space<vmem>>, %arg3: memref<16x128xbf16, #tpu.memory_space<vmem>>, %arg4: memref<64x64xbf16, #tpu.memory_space<vmem>>, %arg5: memref<64x1xf32, #tpu.memory_space<vmem>>, %arg6: memref<32x64xbf16, #tpu.memory_space<vmem>>, %arg7: memref<32x1xf32, #tpu.memory_space<vmem>>, %arg8: memref<16x32xbf16, #tpu.memory_space<vmem>>, %arg9: memref<16x1xf32, #tpu.memory_space<vmem>>, %arg10: memref<16x1xf32, #tpu.memory_space<vmem>>, %arg11: memref<16x1xf32, #tpu.memory_space<vmem>>, %arg12: memref<1x1xf32, #tpu.memory_space<vmem>>, %arg13: memref<1x128xf32, #tpu.memory_space<vmem>>) attributes {dimension_semantics = [#tpu.dimension_semantics<parallel>], iteration_bounds = array<i64: 1>, scalar_prefetch = 0 : i64, scratch_operands = 0 : i64, tpu.core_type = #tpu.core_type<tc>, window_params = [{transform_indices = @transform_0, window_bounds = array<i64: 64, 128>}, {transform_indices = @transform_1, window_bounds = array<i64: 16, 128>}, {transform_indices = @transform_2, window_bounds = array<i64: 16, 128>}, {pipeline_mode = #tpu.pipeline_mode<synchronous>, transform_indices = @transform_3, window_bounds = array<i64: 64, 64>}, {pipeline_mode = #tpu.pipeline_mode<synchronous>, transform_indices = @transform_4, window_bounds = array<i64: 64, 1>}, {pipeline_mode = #tpu.pipeline_mode<synchronous>, transform_indices = @transform_5, window_bounds = array<i64: 32, 64>}, {pipeline_mode = #tpu.pipeline_mode<synchronous>, transform_indices = @transform_6, window_bounds = array<i64: 32, 1>}, {pipeline_mode = #tpu.pipeline_mode<synchronous>, transform_indices = @transform_7, window_bounds = array<i64: 16, 32>}, {pipeline_mode = #tpu.pipeline_mode<synchronous>, transform_indices = @transform_8, window_bounds = array<i64: 16, 1>}, {pipeline_mode = #tpu.pipeline_mode<synchronous>, transform_indices = @transform_9, window_bounds = array<i64: 16, 1>}, {pipeline_mode = #tpu.pipeline_mode<synchronous>, transform_indices = @transform_10, window_bounds = array<i64: 16, 1>}, {pipeline_mode = #tpu.pipeline_mode<synchronous>, transform_indices = @transform_11, window_bounds = array<i64: 1, 1>}, {transform_indices = @transform_12, window_bounds = array<i64: 1, 128>}]} {
    %c0 = arith.constant 0 : index
    %c0_0 = arith.constant 0 : index
    %0 = vector.load %arg4[%c0, %c0_0] : memref<64x64xbf16, #tpu.memory_space<vmem>>, vector<64x64xbf16>
    %c0_1 = arith.constant 0 : index
    %c0_2 = arith.constant 0 : index
    %1 = vector.load %arg1[%c0_1, %c0_2] : memref<64x128xbf16, #tpu.memory_space<vmem>>, vector<64x128xbf16>
    %cst = arith.constant dense<0.000000e+00> : vector<64x128xf32>
    %2 = tpu.matmul %0, %1, %cst {dimension_numbers = #tpu.dot_dimension_numbers<[1], [0], [0], [1], [0, 0, 1, 1], [], []>} : vector<64x64xbf16>, vector<64x128xbf16>, vector<64x128xf32> -> vector<64x128xf32>
    %c0_3 = arith.constant 0 : index
    %c0_4 = arith.constant 0 : index
    %3 = vector.load %arg5[%c0_3, %c0_4] : memref<64x1xf32, #tpu.memory_space<vmem>>, vector<64x1xf32>
    %4 = vector.broadcast %3 : vector<64x1xf32> to vector<64x128xf32>
    %5 = arith.addf %2, %4 : vector<64x128xf32>
    %cst_5 = arith.constant 0.000000e+00 : f32
    %6 = vector.broadcast %cst_5 : f32 to vector<64x128xf32>
    %7 = arith.maximumf %5, %6 : vector<64x128xf32>
    %c0_6 = arith.constant 0 : index
    %c0_7 = arith.constant 0 : index
    %8 = vector.load %arg6[%c0_6, %c0_7] : memref<32x64xbf16, #tpu.memory_space<vmem>>, vector<32x64xbf16>
    %9 = arith.truncf %7 : vector<64x128xf32> to vector<64x128xbf16>
    %cst_8 = arith.constant dense<0.000000e+00> : vector<32x128xf32>
    %10 = tpu.matmul %8, %9, %cst_8 {dimension_numbers = #tpu.dot_dimension_numbers<[1], [0], [0], [1], [0, 0, 1, 1], [], []>} : vector<32x64xbf16>, vector<64x128xbf16>, vector<32x128xf32> -> vector<32x128xf32>
    %c0_9 = arith.constant 0 : index
    %c0_10 = arith.constant 0 : index
    %11 = vector.load %arg7[%c0_9, %c0_10] : memref<32x1xf32, #tpu.memory_space<vmem>>, vector<32x1xf32>
    %12 = vector.broadcast %11 : vector<32x1xf32> to vector<32x128xf32>
    %13 = arith.addf %10, %12 : vector<32x128xf32>
    %cst_11 = arith.constant 0.000000e+00 : f32
    %14 = vector.broadcast %cst_11 : f32 to vector<32x128xf32>
    %15 = arith.maximumf %13, %14 : vector<32x128xf32>
    %c0_12 = arith.constant 0 : index
    %c0_13 = arith.constant 0 : index
    %16 = vector.load %arg8[%c0_12, %c0_13] : memref<16x32xbf16, #tpu.memory_space<vmem>>, vector<16x32xbf16>
    %17 = arith.truncf %15 : vector<32x128xf32> to vector<32x128xbf16>
    %cst_14 = arith.constant dense<0.000000e+00> : vector<16x128xf32>
    %18 = tpu.matmul %16, %17, %cst_14 {dimension_numbers = #tpu.dot_dimension_numbers<[1], [0], [0], [1], [0, 0, 1, 1], [], []>} : vector<16x32xbf16>, vector<32x128xbf16>, vector<16x128xf32> -> vector<16x128xf32>
    %c0_15 = arith.constant 0 : index
    %c0_16 = arith.constant 0 : index
    %19 = vector.load %arg9[%c0_15, %c0_16] : memref<16x1xf32, #tpu.memory_space<vmem>>, vector<16x1xf32>
    %20 = vector.broadcast %19 : vector<16x1xf32> to vector<16x128xf32>
    %21 = arith.addf %18, %20 : vector<16x128xf32>
    %cst_17 = arith.constant 0.000000e+00 : f32
    %22 = vector.broadcast %cst_17 : f32 to vector<16x128xf32>
    %23 = arith.maximumf %21, %22 : vector<16x128xf32>
    %c0_18 = arith.constant 0 : index
    %c0_19 = arith.constant 0 : index
    %24 = vector.load %arg2[%c0_18, %c0_19] : memref<16x128xbf16, #tpu.memory_space<vmem>>, vector<16x128xbf16>
    %25 = arith.extf %24 : vector<16x128xbf16> to vector<16x128xf32>
    %c0_20 = arith.constant 0 : index
    %c0_21 = arith.constant 0 : index
    %26 = vector.load %arg3[%c0_20, %c0_21] : memref<16x128xbf16, #tpu.memory_space<vmem>>, vector<16x128xbf16>
    %27 = arith.extf %26 : vector<16x128xbf16> to vector<16x128xf32>
    %28 = arith.mulf %25, %27 : vector<16x128xf32>
    %c0_22 = arith.constant 0 : index
    %c0_23 = arith.constant 0 : index
    %29 = vector.load %arg10[%c0_22, %c0_23] : memref<16x1xf32, #tpu.memory_space<vmem>>, vector<16x1xf32>
    %30 = vector.broadcast %29 : vector<16x1xf32> to vector<16x128xf32>
    %31 = arith.mulf %23, %30 : vector<16x128xf32>
    %cst_24 = arith.constant dense<0.000000e+00> : vector<128xf32>
    %32 = vector.multi_reduction <add>, %31, %cst_24 [0] : vector<16x128xf32> to vector<128xf32>
    %33 = vector.shape_cast %32 : vector<128xf32> to vector<1x128xf32>
    %c0_25 = arith.constant 0 : index
    %c0_26 = arith.constant 0 : index
    %34 = vector.load %arg11[%c0_25, %c0_26] : memref<16x1xf32, #tpu.memory_space<vmem>>, vector<16x1xf32>
    %35 = vector.broadcast %34 : vector<16x1xf32> to vector<16x128xf32>
    %36 = arith.mulf %28, %35 : vector<16x128xf32>
    %cst_27 = arith.constant dense<0.000000e+00> : vector<128xf32>
    %37 = vector.multi_reduction <add>, %36, %cst_27 [0] : vector<16x128xf32> to vector<128xf32>
    %38 = vector.shape_cast %37 : vector<128xf32> to vector<1x128xf32>
    %39 = arith.addf %33, %38 : vector<1x128xf32>
    %c0_28 = arith.constant 0 : index
    %c0_29 = arith.constant 0 : index
    %40 = vector.load %arg12[%c0_28, %c0_29] : memref<1x1xf32, #tpu.memory_space<vmem>>, vector<1x1xf32>
    %41 = vector.broadcast %40 : vector<1x1xf32> to vector<1x128xf32>
    %42 = arith.addf %39, %41 : vector<1x128xf32>
    %c0_30 = arith.constant 0 : index
    %c0_31 = arith.constant 0 : index
    %43 = vector.load %arg13[%c0_30, %c0_31] : memref<1x128xf32, #tpu.memory_space<vmem>>, vector<1x128xf32>
    tpu.vector_store %arg13[%c0_30, %c0_31], %42 {strides = array<i32>} : memref<1x128xf32, #tpu.memory_space<vmem>>, vector<1x128xf32>,
    return
  }
  func.func @transform_0(%arg0: i32) -> (i32, i32) {
    %c0_i32 = arith.constant 0 : i32
    %c0_i32_0 = arith.constant 0 : i32
    return %c0_i32, %arg0 : i32, i32
  }
  func.func @transform_1(%arg0: i32) -> (i32, i32) {
    %c0_i32 = arith.constant 0 : i32
    %c0_i32_0 = arith.constant 0 : i32
    return %c0_i32, %arg0 : i32, i32
  }
  func.func @transform_2(%arg0: i32) -> (i32, i32) {
    %c0_i32 = arith.constant 0 : i32
    %c0_i32_0 = arith.constant 0 : i32
    return %c0_i32, %arg0 : i32, i32
  }
  func.func @transform_3(%arg0: i32) -> (i32, i32) {
    %c0_i32 = arith.constant 0 : i32
    %c0_i32_0 = arith.constant 0 : i32
    %c0_i32_1 = arith.constant 0 : i32
    return %c0_i32, %c0_i32_0 : i32, i32
  }
  func.func @transform_4(%arg0: i32) -> (i32, i32) {
    %c0_i32 = arith.constant 0 : i32
    %c0_i32_0 = arith.constant 0 : i32
    %c0_i32_1 = arith.constant 0 : i32
    return %c0_i32, %c0_i32_0 : i32, i32
  }
  func.func @transform_5(%arg0: i32) -> (i32, i32) {
    %c0_i32 = arith.constant 0 : i32
    %c0_i32_0 = arith.constant 0 : i32
    %c0_i32_1 = arith.constant 0 : i32
    return %c0_i32, %c0_i32_0 : i32, i32
  }
  func.func @transform_6(%arg0: i32) -> (i32, i32) {
    %c0_i32 = arith.constant 0 : i32
    %c0_i32_0 = arith.constant 0 : i32
    %c0_i32_1 = arith.constant 0 : i32
    return %c0_i32, %c0_i32_0 : i32, i32
  }
  func.func @transform_7(%arg0: i32) -> (i32, i32) {
    %c0_i32 = arith.constant 0 : i32
    %c0_i32_0 = arith.constant 0 : i32
    %c0_i32_1 = arith.constant 0 : i32
    return %c0_i32, %c0_i32_0 : i32, i32
  }
  func.func @transform_8(%arg0: i32) -> (i32, i32) {
    %c0_i32 = arith.constant 0 : i32
    %c0_i32_0 = arith.constant 0 : i32
    %c0_i32_1 = arith.constant 0 : i32
    return %c0_i32, %c0_i32_0 : i32, i32
  }
  func.func @transform_9(%arg0: i32) -> (i32, i32) {
    %c0_i32 = arith.constant 0 : i32
    %c0_i32_0 = arith.constant 0 : i32
    %c0_i32_1 = arith.constant 0 : i32
    return %c0_i32, %c0_i32_0 : i32, i32
  }
  func.func @transform_10(%arg0: i32) -> (i32, i32) {
    %c0_i32 = arith.constant 0 : i32
    %c0_i32_0 = arith.constant 0 : i32
    %c0_i32_1 = arith.constant 0 : i32
    return %c0_i32, %c0_i32_0 : i32, i32
  }
  func.func @transform_11(%arg0: i32) -> (i32, i32) {
    %c0_i32 = arith.constant 0 : i32
    %c0_i32_0 = arith.constant 0 : i32
    %c0_i32_1 = arith.constant 0 : i32
    return %c0_i32, %c0_i32_0 : i32, i32
  }
  func.func @transform_12(%arg0: i32) -> (i32, i32) {
    %c0_i32 = arith.constant 0 : i32
    %c0_i32_0 = arith.constant 0 : i32
    return %c0_i32, %arg0 : i32, i32
  }
}

</mosaic_0001>

<llo_original>
// kernel: tpu_custom_call.1
$region0: #{tpu_custom_call.1}
  #allocation0 [shape = 'u32[]', space=smem, size = 0x4, offset = 0x4, fixed_abs, tag = 'smem constant byte address 0x4 - core index']
  #allocation1 [shape = 'u32[144,128]{1,0:T(1,128)}', space=vmem, size = 0x12000, scoped, tag = 'internal scratch']
  #allocation2 [shape = 'f32[1,1]{1,0:T(1,128)S(1)}', space=vmem, size = 0x200, scoped, tag = 'scoped memory for tpu_custom_call.1']
  %s0 = inlined_call_operand.vmem [shape: bf16[64,128], index: 0, kind: input, shape index: {}]
  %s1 = inlined_call_operand.vmem [shape: bf16[16,128], index: 1, kind: input, shape index: {}]
  %s2 = inlined_call_operand.vmem [shape: bf16[16,128], index: 2, kind: input, shape index: {}]
  %s3 = inlined_call_operand.vmem [shape: bf16[64,64], index: 3, kind: input, shape index: {}]
  %s4 = inlined_call_operand.vmem [shape: f32[64,1], index: 4, kind: input, shape index: {}]
  %s5 = inlined_call_operand.vmem [shape: bf16[32,64], index: 5, kind: input, shape index: {}]
  %s6 = inlined_call_operand.vmem [shape: f32[32,1], index: 6, kind: input, shape index: {}]
  %s7 = inlined_call_operand.vmem [shape: bf16[16,32], index: 7, kind: input, shape index: {}]
  %s8 = inlined_call_operand.vmem [shape: f32[16,1], index: 8, kind: input, shape index: {}]
  %s9 = inlined_call_operand.vmem [shape: f32[16,1], index: 9, kind: input, shape index: {}]
  %s10 = inlined_call_operand.vmem [shape: f32[16,1], index: 10, kind: input, shape index: {}]
  %s11 = inlined_call_operand.<no memory space> [shape: f32[1,1], index: 11, kind: input, shape index: {}]
  %s12 = inlined_call_operand.hbm [shape: f32[1,128], index: 12, kind: output, shape index: {}]
  %s13 = sld [smem:[#allocation0]]
  $region58: #{tpu_custom_call.1} parent=0
    _
  %s15 = ssub.s32 1, %s13
  %s16 = scalar_select 0, %s15, %s13
  %v17 = vstv %s11
  %18 = vst [vmem:[#allocation2] sm:$0x1] %v17
  $region1: #{tpu_custom_call.1} parent=0
    #allocation3 [shape = 'u8[512]{0}', space=vmem, size = 0x400, scoped, tag = 'output window, operand 0, single buffered']
    #allocation4 [shape = 's32[1]{0}', space=sflag, size = 0x4, scoped, tag = 'scoped memory for tpu_custom_call.1']
    %19 = vsyncpa [#allocation4], 0
    // Predicated region
    $region2: #{tpu_custom_call.1} parent=1 // pred_check
      _
    $region3: #{tpu_custom_call.1} parent=1 // pred_check_branch
      %21 = sbr.rel (0) target = $region5
    $region4: #{tpu_custom_call.1} parent=1 // pred_region
      _
    $region5: #{tpu_custom_call.1} parent=1 // pred_fallthru
      _
    // Predicated region
    $region6: #{tpu_custom_call.1} parent=1 // pred_check
      _
    $region7: #{tpu_custom_call.1} parent=1 // pred_check_branch
      %23 = sbr.rel (0) target = $region9
    $region8: #{tpu_custom_call.1} parent=1 // pred_region
      _
    $region9: #{tpu_custom_call.1} parent=1 // pred_fallthru
      _
    // Predicated region
    $region10: #{tpu_custom_call.1} parent=1 // pred_check
      _
    $region11: #{tpu_custom_call.1} parent=1 // pred_check_branch
      %25 = sbr.rel (0) target = $region13
    $region12: #{tpu_custom_call.1} parent=1 // pred_region
      _
    $region13: #{tpu_custom_call.1} parent=1 // pred_fallthru
      _
    // Predicated region
    $region14: #{tpu_custom_call.1} parent=1 // pred_check
      _
    $region15: #{tpu_custom_call.1} parent=1 // pred_check_branch
      %27 = sbr.rel (0) target = $region17
    $region16: #{tpu_custom_call.1} parent=1 // pred_region
      _
    $region17: #{tpu_custom_call.1} parent=1 // pred_fallthru
      _
    // Predicated region
    $region18: #{tpu_custom_call.1} parent=1 // pred_check
      _
    $region19: #{tpu_custom_call.1} parent=1 // pred_check_branch
      %29 = sbr.rel (0) target = $region21
    $region20: #{tpu_custom_call.1} parent=1 // pred_region
      _
    $region21: #{tpu_custom_call.1} parent=1 // pred_fallthru
      _
    // Predicated region
    $region22: #{tpu_custom_call.1} parent=1 // pred_check
      _
    $region23: #{tpu_custom_call.1} parent=1 // pred_check_branch
      %31 = sbr.rel (0) target = $region25
    $region24: #{tpu_custom_call.1} parent=1 // pred_region
      _
    $region25: #{tpu_custom_call.1} parent=1 // pred_fallthru
      _
    // Predicated region
    $region26: #{tpu_custom_call.1} parent=1 // pred_check
      _
    $region27: #{tpu_custom_call.1} parent=1 // pred_check_branch
      %33 = sbr.rel (0) target = $region29
    $region28: #{tpu_custom_call.1} parent=1 // pred_region
      _
    $region29: #{tpu_custom_call.1} parent=1 // pred_fallthru
      _
    // Predicated region
    $region30: #{tpu_custom_call.1} parent=1 // pred_check
      _
    $region31: #{tpu_custom_call.1} parent=1 // pred_check_branch
      %35 = sbr.rel (0) target = $region33
    $region32: #{tpu_custom_call.1} parent=1 // pred_region
      _
    $region33: #{tpu_custom_call.1} parent=1 // pred_fallthru
      _
    // Predicated region
    $region34: #{tpu_custom_call.1} parent=1 // pred_check
      _
    $region35: #{tpu_custom_call.1} parent=1 // pred_check_branch
      %37 = sbr.rel (0) target = $region37
    $region36: #{tpu_custom_call.1} parent=1 // pred_region
      _
    $region37: #{tpu_custom_call.1} parent=1 // pred_fallthru
      _
    // Predicated region
    $region38: #{tpu_custom_call.1} parent=1 // pred_check
      _
    $region39: #{tpu_custom_call.1} parent=1 // pred_check_branch
      %39 = sbr.rel (0) target = $region41
    $region40: #{tpu_custom_call.1} parent=1 // pred_region
      _
    $region41: #{tpu_custom_call.1} parent=1 // pred_fallthru
      _
    // Predicated region
    $region42: #{tpu_custom_call.1} parent=1 // pred_check
      _
    $region43: #{tpu_custom_call.1} parent=1 // pred_check_branch
      %41 = sbr.rel (0) target = $region45
    $region44: #{tpu_custom_call.1} parent=1 // pred_region
      _
    $region45: #{tpu_custom_call.1} parent=1 // pred_fallthru
      _
    // Predicated region
    $region46: #{tpu_custom_call.1} parent=1 // pred_check
      _
    $region47: #{tpu_custom_call.1} parent=1 // pred_check_branch
      %43 = sbr.rel (0) target = $region49
    $region48: #{tpu_custom_call.1} parent=1 // pred_region
      _
    $region49: #{tpu_custom_call.1} parent=1 // pred_fallthru
      _
    %v45 = vld [vmem:[%s3] sm:$0xf]
    %v46 = vld [vmem:[%s3 + $0x4] sm:$0xf]
    %v47 = vld [vmem:[%s3 + $0x8] sm:$0xf]
    %v48 = vld [vmem:[%s3 + $0xc] sm:$0xf]
    %v49 = vld [vmem:[%s3 + $0x10] sm:$0xf]
    %v50 = vld [vmem:[%s3 + $0x14] sm:$0xf]
    %v51 = vld [vmem:[%s3 + $0x18] sm:$0xf]
    %v52 = vld [vmem:[%s3 + $0x1c] sm:$0xf]
    %v53 = vld [vmem:[%s0] sm:$0xf]
    %v54 = vld [vmem:[%s0 + $0x4] sm:$0xf]
    %v55 = vld [vmem:[%s0 + $0x8] sm:$0xf]
    %v56 = vld [vmem:[%s0 + $0xc] sm:$0xf]
    %v57 = vld [vmem:[%s0 + $0x10] sm:$0xf]
    %v58 = vld [vmem:[%s0 + $0x14] sm:$0xf]
    %v59 = vld [vmem:[%s0 + $0x18] sm:$0xf]
    %v60 = vld [vmem:[%s0 + $0x1c] sm:$0xf]
    %v61 = vld [vmem:[%s4] sm:$0xff]
    %v62 = vld [vmem:[%s4 + $0x8] sm:$0xff]
    %v63 = vld [vmem:[%s4 + $0x10] sm:$0xff]
    %v64 = vld [vmem:[%s4 + $0x18] sm:$0xff]
    %v65 = vld [vmem:[%s4 + $0x20] sm:$0xff]
    %v66 = vld [vmem:[%s4 + $0x28] sm:$0xff]
    %v67 = vld [vmem:[%s4 + $0x30] sm:$0xff]
    %v68 = vld [vmem:[%s4 + $0x38] sm:$0xff]
    %70 = vset.pattern.permute.xlu0 0
    %71 = vperm.xlu0 %70, %v61
    %v72 = vpop.permute.xlu0 %71
    %75 = vset.pattern.permute.xlu0 0
    %76 = vperm.xlu0 %75, %v62
    %v77 = vpop.permute.xlu0 %76
    %80 = vset.pattern.permute.xlu0 0
    %81 = vperm.xlu0 %80, %v63
    %v82 = vpop.permute.xlu0 %81
    %85 = vset.pattern.permute.xlu0 0
    %86 = vperm.xlu0 %85, %v64
    %v87 = vpop.permute.xlu0 %86
    %90 = vset.pattern.permute.xlu0 0
    %91 = vperm.xlu0 %90, %v65
    %v92 = vpop.permute.xlu0 %91
    %95 = vset.pattern.permute.xlu0 0
    %96 = vperm.xlu0 %95, %v66
    %v97 = vpop.permute.xlu0 %96
    %100 = vset.pattern.permute.xlu0 0
    %101 = vperm.xlu0 %100, %v67
    %v102 = vpop.permute.xlu0 %101
    %105 = vset.pattern.permute.xlu0 0
    %106 = vperm.xlu0 %105, %v68
    %v107 = vpop.permute.xlu0 %106
    %v117 = vunpack.c.l.b16 %v45
    %v118 = vunpack.c.l.b16 %v46
    %v119 = vunpack.c.l.b16 %v47
    %v120 = vunpack.c.l.b16 %v48
    %v121 = vunpack.c.l.b16 %v49
    %v122 = vunpack.c.l.b16 %v50
    %v123 = vunpack.c.l.b16 %v51
    %v124 = vunpack.c.l.b16 %v52
    %v125 = vpack.c.b16 %v118, %v117
    %v126 = vpack.c.b16 %v120, %v119
    %v127 = vpack.c.b16 %v122, %v121
    %v128 = vpack.c.b16 %v124, %v123
    %v137 = vunpack.c.l.b16 %v53
    %v138 = vunpack.c.l.b16 %v54
    %v139 = vunpack.c.l.b16 %v55
    %v140 = vunpack.c.l.b16 %v56
    %v141 = vunpack.c.l.b16 %v57
    %v142 = vunpack.c.l.b16 %v58
    %v143 = vunpack.c.l.b16 %v59
    %v144 = vunpack.c.l.b16 %v60
    %v145 = vpack.c.b16 %v138, %v137
    %v146 = vpack.c.b16 %v140, %v139
    %v147 = vpack.c.b16 %v142, %v141
    %v148 = vpack.c.b16 %v144, %v143
    %vm153 = vcmask 523264
    %v155 = vsel %vm153, %v125, 0
    %v158 = vsel %vm153, %v126, 0
    %v161 = vsel %vm153, %v127, 0
    %v164 = vsel %vm153, %v128, 0
    %166 = vmatprep.subr.bf16.mxu0 0
    %167 = vmatpush1.bf16.msra.mxu0 0
    %168 = vmatprep.subr.bf16.mxu0 0
    %169 = vmatpush1.bf16.msra.mxu0 0
    %170 = vmatprep.subr.bf16.mxu0 0
    %171 = vmatpush1.bf16.msra.mxu0 0
    %172 = vmatprep.subr.bf16.mxu0 0
    %173 = vmatpush1.bf16.msra.mxu0 0
    %174 = vmatprep.subr.bf16.mxu0 0
    %175 = vmatpush1.bf16.msra.mxu0 %v148
    %176 = vmatprep.subr.bf16.mxu0 0
    %177 = vmatpush1.bf16.msra.mxu0 %v147
    %178 = vmatprep.subr.bf16.mxu0 0
    %179 = vmatpush1.bf16.msra.mxu0 %v146
    %180 = vmatprep.subr.bf16.mxu0 0
    %181 = vmatpush1.bf16.msra.mxu0 %v145
    %182 = vmatprep.subr.bf16.mxu0 0
    %183 = vmatpush2.bf16.msra.mxu0 0
    %184 = vmatprep.subr.bf16.mxu0 0
    %185 = vmatpush2.bf16.msra.mxu0 0
    %186 = vmatprep.subr.bf16.mxu0 0
    %187 = vmatpush2.bf16.msra.mxu0 0
    %188 = vmatprep.subr.bf16.mxu0 0
    %189 = vmatpush2.bf16.msra.mxu0 0
    %190 = vmatprep.subr.bf16.mxu0 0
    %191 = vmatpush2.bf16.msra.mxu0 0
    %192 = vmatprep.subr.bf16.mxu0 0
    %193 = vmatpush2.bf16.msra.mxu0 0
    %194 = vmatprep.subr.bf16.mxu0 0
    %195 = vmatpush2.bf16.msra.mxu0 0
    %196 = vmatprep.subr.bf16.mxu0 0
    %197 = vmatpush2.bf16.msra.mxu0 0
    %198 = vmatprep.mubr.bf16.mxu0 0
    %199 = vmatmul.mubr.bf16.gmra.mxu0 %v155
    %v200 = vpop.f32.mrf.mxu0
    %v201 = vadd.f32 %v72, %v200
    %v202 = vpop.f32.mrf.mxu0
    %v203 = vpop.f32.mrf.mxu0
    %v204 = vadd.f32 %v77, %v203
    %v205 = vpop.f32.mrf.mxu0
    %206 = vmatprep.mubr.bf16.mxu0 0
    %207 = vmatmul.mubr.bf16.gmra.mxu0 %v158
    %v208 = vpop.f32.mrf.mxu0
    %v209 = vadd.f32 %v82, %v208
    %v210 = vpop.f32.mrf.mxu0
    %v211 = vpop.f32.mrf.mxu0
    %v212 = vadd.f32 %v87, %v211
    %v213 = vpop.f32.mrf.mxu0
    %214 = vmatprep.mubr.bf16.mxu0 0
    %215 = vmatmul.mubr.bf16.gmra.mxu0 %v161
    %v216 = vpop.f32.mrf.mxu0
    %v217 = vadd.f32 %v92, %v216
    %v218 = vpop.f32.mrf.mxu0
    %v219 = vpop.f32.mrf.mxu0
    %v220 = vadd.f32 %v97, %v219
    %v221 = vpop.f32.mrf.mxu0
    %222 = vmatprep.mubr.bf16.mxu0 0
    %223 = vmatmul.mubr.bf16.gmra.mxu0 %v164
    %v224 = vpop.f32.mrf.mxu0
    %v225 = vadd.f32 %v102, %v224
    %v226 = vpop.f32.mrf.mxu0
    %v227 = vpop.f32.mrf.mxu0
    %v228 = vadd.f32 %v107, %v227
    %v229 = vpop.f32.mrf.mxu0
    %230 = vdwg.mxu0
    %v231 = vmax.f32 %v201, 0.0
    %v232 = vmax.f32 %v204, 0.0
    %v233 = vmax.f32 %v209, 0.0
    %v234 = vmax.f32 %v212, 0.0
    %v235 = vmax.f32 %v217, 0.0
    %v236 = vmax.f32 %v220, 0.0
    %v237 = vmax.f32 %v225, 0.0
    %v238 = vmax.f32 %v228, 0.0
    %v239 = vld [vmem:[%s5] sm:$0xf]
    %v240 = vld [vmem:[%s5 + $0x4] sm:$0xf]
    %v241 = vld [vmem:[%s5 + $0x8] sm:$0xf]
    %v242 = vld [vmem:[%s5 + $0xc] sm:$0xf]
    %v243 = vpack.c.bf16 %v232, %v231
    %v244 = vpack.c.bf16 %v234, %v233
    %v245 = vpack.c.bf16 %v236, %v235
    %v246 = vpack.c.bf16 %v238, %v237
    %v247 = vld [vmem:[%s6] sm:$0xff]
    %v248 = vld [vmem:[%s6 + $0x8] sm:$0xff]
    %v249 = vld [vmem:[%s6 + $0x10] sm:$0xff]
    %v250 = vld [vmem:[%s6 + $0x18] sm:$0xff]
    %252 = vset.pattern.permute.xlu0 0
    %253 = vperm.xlu0 %252, %v247
    %v254 = vpop.permute.xlu0 %253
    %257 = vset.pattern.permute.xlu0 0
    %258 = vperm.xlu0 %257, %v248
    %v259 = vpop.permute.xlu0 %258
    %262 = vset.pattern.permute.xlu0 0
    %263 = vperm.xlu0 %262, %v249
    %v264 = vpop.permute.xlu0 %263
    %267 = vset.pattern.permute.xlu0 0
    %268 = vperm.xlu0 %267, %v250
    %v269 = vpop.permute.xlu0 %268
    %v275 = vunpack.c.l.b16 %v239
    %v276 = vunpack.c.l.b16 %v240
    %v277 = vunpack.c.l.b16 %v241
    %v278 = vunpack.c.l.b16 %v242
    %v279 = vpack.c.b16 %v276, %v275
    %v280 = vpack.c.b16 %v278, %v277
    %v282 = vsel %vm153, %v279, 0
    %v285 = vsel %vm153, %v280, 0
    %287 = vmatprep.subr.bf16.mxu0 0
    %288 = vmatpush1.bf16.msra.mxu0 0
    %289 = vmatprep.subr.bf16.mxu0 0
    %290 = vmatpush1.bf16.msra.mxu0 0
    %291 = vmatprep.subr.bf16.mxu0 0
    %292 = vmatpush1.bf16.msra.mxu0 0
    %293 = vmatprep.subr.bf16.mxu0 0
    %294 = vmatpush1.bf16.msra.mxu0 0
    %295 = vmatprep.subr.bf16.mxu0 0
    %296 = vmatpush1.bf16.msra.mxu0 %v246
    %297 = vmatprep.subr.bf16.mxu0 0
    %298 = vmatpush1.bf16.msra.mxu0 %v245
    %299 = vmatprep.subr.bf16.mxu0 0
    %300 = vmatpush1.bf16.msra.mxu0 %v244
    %301 = vmatprep.subr.bf16.mxu0 0
    %302 = vmatpush1.bf16.msra.mxu0 %v243
    %303 = vmatprep.subr.bf16.mxu0 0
    %304 = vmatpush2.bf16.msra.mxu0 0
    %305 = vmatprep.subr.bf16.mxu0 0
    %306 = vmatpush2.bf16.msra.mxu0 0
    %307 = vmatprep.subr.bf16.mxu0 0
    %308 = vmatpush2.bf16.msra.mxu0 0
    %309 = vmatprep.subr.bf16.mxu0 0
    %310 = vmatpush2.bf16.msra.mxu0 0
    %311 = vmatprep.subr.bf16.mxu0 0
    %312 = vmatpush2.bf16.msra.mxu0 0
    %313 = vmatprep.subr.bf16.mxu0 0
    %314 = vmatpush2.bf16.msra.mxu0 0
    %315 = vmatprep.subr.bf16.mxu0 0
    %316 = vmatpush2.bf16.msra.mxu0 0
    %317 = vmatprep.subr.bf16.mxu0 0
    %318 = vmatpush2.bf16.msra.mxu0 0
    %319 = vmatprep.mubr.bf16.mxu0 0
    %320 = vmatmul.mubr.bf16.gmra.mxu0 %v282
    %v321 = vpop.f32.mrf.mxu0
    %v322 = vadd.f32 %v254, %v321
    %v323 = vpop.f32.mrf.mxu0
    %v324 = vpop.f32.mrf.mxu0
    %v325 = vadd.f32 %v259, %v324
    %v326 = vpop.f32.mrf.mxu0
    %327 = vmatprep.mubr.bf16.mxu0 0
    %328 = vmatmul.mubr.bf16.gmra.mxu0 %v285
    %v329 = vpop.f32.mrf.mxu0
    %v330 = vadd.f32 %v264, %v329
    %v331 = vpop.f32.mrf.mxu0
    %v332 = vpop.f32.mrf.mxu0
    %v333 = vadd.f32 %v269, %v332
    %v334 = vpop.f32.mrf.mxu0
    %335 = vdwg.mxu0
    %v336 = vmax.f32 %v322, 0.0
    %v337 = vmax.f32 %v325, 0.0
    %v338 = vmax.f32 %v330, 0.0
    %v339 = vmax.f32 %v333, 0.0
    %v340 = vld [vmem:[%s7] sm:$0xf]
    %v341 = vld [vmem:[%s7 + $0x4] sm:$0xf]
    %v342 = vpack.c.bf16 %v337, %v336
    %v343 = vpack.c.bf16 %v339, %v338
    %v344 = vld [vmem:[%s8] sm:$0xff]
    %v345 = vld [vmem:[%s8 + $0x8] sm:$0xff]
    %347 = vset.pattern.permute.xlu0 0
    %348 = vperm.xlu0 %347, %v344
    %v349 = vpop.permute.xlu0 %348
    %352 = vset.pattern.permute.xlu0 0
    %353 = vperm.xlu0 %352, %v345
    %v354 = vpop.permute.xlu0 %353
    %v358 = vunpack.c.l.b16 %v340
    %v359 = vunpack.c.l.b16 %v341
    %v360 = vpack.c.b16 %v359, %v358
    %vm361 = vcmask 261120
    %v363 = vsel %vm361, %v360, 0
    %365 = vmatprep.subr.bf16.mxu0 0
    %366 = vmatpush1.bf16.msra.mxu0 0
    %367 = vmatprep.subr.bf16.mxu0 0
    %368 = vmatpush1.bf16.msra.mxu0 0
    %369 = vmatprep.subr.bf16.mxu0 0
    %370 = vmatpush1.bf16.msra.mxu0 0
    %371 = vmatprep.subr.bf16.mxu0 0
    %372 = vmatpush1.bf16.msra.mxu0 0
    %373 = vmatprep.subr.bf16.mxu0 0
    %374 = vmatpush1.bf16.msra.mxu0 0
    %375 = vmatprep.subr.bf16.mxu0 0
    %376 = vmatpush1.bf16.msra.mxu0 0
    %377 = vmatprep.subr.bf16.mxu0 0
    %378 = vmatpush1.bf16.msra.mxu0 %v343
    %379 = vmatprep.subr.bf16.mxu0 0
    %380 = vmatpush1.bf16.msra.mxu0 %v342
    %381 = vmatprep.subr.bf16.mxu0 0
    %382 = vmatpush2.bf16.msra.mxu0 0
    %383 = vmatprep.subr.bf16.mxu0 0
    %384 = vmatpush2.bf16.msra.mxu0 0
    %385 = vmatprep.subr.bf16.mxu0 0
    %386 = vmatpush2.bf16.msra.mxu0 0
    %387 = vmatprep.subr.bf16.mxu0 0
    %388 = vmatpush2.bf16.msra.mxu0 0
    %389 = vmatprep.subr.bf16.mxu0 0
    %390 = vmatpush2.bf16.msra.mxu0 0
    %391 = vmatprep.subr.bf16.mxu0 0
    %392 = vmatpush2.bf16.msra.mxu0 0
    %393 = vmatprep.subr.bf16.mxu0 0
    %394 = vmatpush2.bf16.msra.mxu0 0
    %395 = vmatprep.subr.bf16.mxu0 0
    %396 = vmatpush2.bf16.msra.mxu0 0
    %397 = vmatprep.mubr.bf16.mxu0 0
    %398 = vmatmul.mubr.bf16.gmra.mxu0 %v363
    %v399 = vpop.f32.mrf.mxu0
    %v400 = vadd.f32 %v349, %v399
    %v401 = vpop.f32.mrf.mxu0
    %v402 = vpop.f32.mrf.mxu0
    %v403 = vadd.f32 %v354, %v402
    %v404 = vpop.f32.mrf.mxu0
    %405 = vdwg.mxu0
    %v406 = vmax.f32 %v400, 0.0
    %v407 = vmax.f32 %v403, 0.0
    %v408 = vld [vmem:[%s1] sm:$0xf]
    %v409 = vld [vmem:[%s1 + $0x4] sm:$0xf]
    %v410 = vunpack.c.l.bf16 %v408
    %v411 = vunpack.c.l.bf16 %v409
    %v412 = vld [vmem:[%s2] sm:$0xf]
    %v413 = vld [vmem:[%s2 + $0x4] sm:$0xf]
    %v414 = vunpack.c.l.bf16 %v412
    %v415 = vunpack.c.l.bf16 %v413
    %v416 = vmul.f32 %v410, %v414
    %v417 = vmul.f32 %v411, %v415
    %v418 = vld [vmem:[%s9] sm:$0xff]
    %v419 = vld [vmem:[%s9 + $0x8] sm:$0xff]
    %421 = vset.pattern.permute.xlu0 0
    %422 = vperm.xlu0 %421, %v418
    %v423 = vpop.permute.xlu0 %422
    %426 = vset.pattern.permute.xlu0 0
    %427 = vperm.xlu0 %426, %v419
    %v428 = vpop.permute.xlu0 %427
    %v430 = vmul.f32 %v406, %v423
    %v431 = vmul.f32 %v407, %v428
    %v432 = vadd.f32 %v430, %v431
    %v433 = vrot.slane %v432, 4
    %v434 = vadd.f32 %v432, %v433
    %v435 = vrot.slane %v434, 2
    %v436 = vadd.f32 %v434, %v435
    %v437 = vrot.slane %v436, 1
    %v438 = vadd.f32 %v436, %v437
    %v439 = vld [vmem:[%s10] sm:$0xff]
    %v440 = vld [vmem:[%s10 + $0x8] sm:$0xff]
    %442 = vset.pattern.permute.xlu0 0
    %443 = vperm.xlu0 %442, %v439
    %v444 = vpop.permute.xlu0 %443
    %447 = vset.pattern.permute.xlu0 0
    %448 = vperm.xlu0 %447, %v440
    %v449 = vpop.permute.xlu0 %448
    %v451 = vmul.f32 %v416, %v444
    %v452 = vmul.f32 %v417, %v449
    %v453 = vadd.f32 %v451, %v452
    %v454 = vrot.slane %v453, 4
    %v455 = vadd.f32 %v453, %v454
    %v456 = vrot.slane %v455, 2
    %v457 = vadd.f32 %v455, %v456
    %v458 = vrot.slane %v457, 1
    %v459 = vadd.f32 %v457, %v458
    %v460 = vadd.f32 %v438, %v459
    %v461 = vld [vmem:[#allocation2] sm:$0x1]
    %463 = vset.pattern.permute.xlu0 0
    %464 = vperm.xlu0 %463, %v461
    %v465 = vpop.permute.xlu0 %464
    %v467 = vlaneseq
    %v468 = vshrl.u32 %v467, 7
    %v469 = vsub.s32 0, %v468
    %v470 = vrot.slane %v465, %v469
    %v471 = vadd.f32 %v460, %v470
    %472 = vst [vmem:[#allocation3] sm:$0x1] %v471
    // Predicated region
    $region50: #{tpu_custom_call.1} parent=1 // pred_check
      _
    $region51: #{tpu_custom_call.1} parent=1 // pred_check_branch
      %474 = sbr.rel (0) target = $region53
    $region52: #{tpu_custom_call.1} parent=1 // pred_region
      %s476 = ssub.s32 16, 16
      %477 = vsyncadd [#allocation4], %s476
      %s479 = sshll.u32 [#allocation3], 4
      %s480 = int_to_ptr.vmem [resolvable:$true] %s479
      %482 = dma.vmem_to_hbm [thread:$0]  %s480, 16, %s12, [#allocation4]
    $region53: #{tpu_custom_call.1} parent=1 // pred_fallthru
      _
    // Predicated region
    $region54: #{tpu_custom_call.1} parent=1 // pred_check
      _
    $region55: #{tpu_custom_call.1} parent=1 // pred_check_branch
      %484 = sbr.rel (0) target = $region57
    $region56: #{tpu_custom_call.1} parent=1 // pred_region
      %485 = dma.done [#allocation4], 16
    $region57: #{tpu_custom_call.1} parent=1 // pred_fallthru
      _
    %486 = vsyncpa [#allocation4], 1

</llo_original>
